<compile_context>
chip_gen: v6e
topology: v6e:2x2x1
jax: 0.10.0
libtpu: 0.0.40
codegen_flags: <defaults>
</compile_context>

<pallas_src>
import jax
import jax.numpy as jnp
from jax.experimental import pallas as pl
from jax.experimental.pallas import tpu as pltpu

# Model sizes (from the PyTorch module).
N_FEATURES = 1 + 2 * 24 * 7      # 337
N_HIDDEN = 100
N_PREDICTED = 2 * 24 * 3         # 144
SCALE_POWER = 50000.0

H_PAD = 128                      # hidden 100 -> 128 (weights only; VMEM-resident)


def elecnn_kernel(ts_ref, w1_ref, b1_ref, w2_ref, b2_ref, y_ref):
    # ts_ref: (TILE_B, 337)  raw MW windows (f32 or bf16; 1/50000 folded into w1)
    # w1_ref: (337, 128)  = w1.T / 50000        (bf16 or f32, resident)
    # b1_ref: (1, 128)    f32                    (resident)
    # w2_ref: (128, 144)  = 50000 * w2.T         (bf16 or f32, resident)
    # b2_ref: (1, 144)    = 50000 * b2, f32      (resident)
    # y_ref : (TILE_B, 144) f32 final forecasts (already scaled)
    h = jnp.dot(ts_ref[...], w1_ref[...],
                preferred_element_type=jnp.float32) + b1_ref[...]
    h = jnp.maximum(h, 0.0)
    y = jnp.dot(h.astype(w2_ref.dtype), w2_ref[...],
                preferred_element_type=jnp.float32) + b2_ref[...]
    y_ref[...] = jnp.maximum(y, 0.0)


def prepare_params(w1, b1, w2, b2, weight_dtype=jnp.bfloat16):
    """One-time parameter preparation (do NOT call per forward).

    Takes PyTorch nn.Linear layout (out_features, in_features) weights, then:
      - transposes to (in, out) for row-vector matmuls,
      - folds 1/50000 into w1 and 50000 into w2/b2 (positive scale commutes
        with ReLU),
      - zero-pads the hidden dim 100 -> 128 (lane-friendly; zero rows/cols are
        inert),
      - casts weights to `weight_dtype` (biases stay f32).
    """
    w1 = jnp.asarray(w1, jnp.float32).T / SCALE_POWER        # (337, 100)
    w2 = jnp.asarray(w2, jnp.float32).T * SCALE_POWER        # (100, 144)
    b1 = jnp.asarray(b1, jnp.float32)                        # (100,)
    b2 = jnp.asarray(b2, jnp.float32) * SCALE_POWER          # (144,)

    w1p = jnp.zeros((N_FEATURES, H_PAD), jnp.float32).at[:, :N_HIDDEN].set(w1)
    w2p = jnp.zeros((H_PAD, N_PREDICTED), jnp.float32).at[:N_HIDDEN, :].set(w2)
    b1p = jnp.zeros((1, H_PAD), jnp.float32).at[0, :N_HIDDEN].set(b1)
    b2p = b2.reshape(1, N_PREDICTED)
    return (w1p.astype(weight_dtype), b1p, w2p.astype(weight_dtype), b2p)


def _choose_tile_b(batch: int) -> int:
    """Batch tile: as large as 512 rows while keeping >= 2 grid blocks (so the
    two v7x TensorCores both get work via dimension_semantics=parallel); tiny
    batches collapse to a single sublane-rounded block."""
    for tile in (512, 256, 128, 64, 32, 16, 8):
        if batch >= 2 * tile:
            return tile
    return max(8, pl.cdiv(batch, 8) * 8)


@jax.jit
def elecnn_forward_batched(ts_windows, params):
    """ts_windows: (B, 337) raw MW windows (f32 or bf16). Returns (B, 144) f32."""
    w1p, b1p, w2p, b2p = params
    B = ts_windows.shape[0]
    tile_b = _choose_tile_b(B)
    b_pad = pl.cdiv(B, tile_b) * tile_b

    ts = ts_windows
    if b_pad != B:
        # Only when B isn't a tile multiple; padded rows produce relu(bias)
        # garbage which is sliced off below.
        ts = jnp.pad(ts, ((0, b_pad - B), (0, 0)))

    y = pl.pallas_call(
        elecnn_kernel,
        out_shape=jax.ShapeDtypeStruct((b_pad, N_PREDICTED), jnp.float32),
        grid=(b_pad // tile_b,),
        in_specs=[
            pl.BlockSpec((tile_b, N_FEATURES), lambda i: (i, 0)),    # ts tile
            pl.BlockSpec((N_FEATURES, H_PAD), lambda i: (0, 0)),     # w1 (resident)
            pl.BlockSpec((1, H_PAD), lambda i: (0, 0)),              # b1 (resident)
            pl.BlockSpec((H_PAD, N_PREDICTED), lambda i: (0, 0)),    # w2 (resident)
            pl.BlockSpec((1, N_PREDICTED), lambda i: (0, 0)),        # b2 (resident)
        ],
        out_specs=pl.BlockSpec((tile_b, N_PREDICTED), lambda i: (i, 0)),
        compiler_params=pltpu.CompilerParams(
            dimension_semantics=("parallel",)),
    )(ts, w1p, b1p, w2p, b2p)

    return y if b_pad == B else y[:B]


def elecnn_forward(ts_window, params):
    """Single-window convenience path: (337,) -> (144,)."""
    return elecnn_forward_batched(ts_window.reshape(1, N_FEATURES), params)[0]


if __name__ == "__main__":
    key = jax.random.PRNGKey(0)
    k_w1, k_b1, k_w2, k_b2, k_data = jax.random.split(key, 5)

    # nn.Linear-style init, PyTorch (out_features, in_features) layout.
    bound1 = 1.0 / float(N_FEATURES) ** 0.5
    bound2 = 1.0 / float(N_HIDDEN) ** 0.5
    w1 = jax.random.uniform(k_w1, (N_HIDDEN, N_FEATURES), jnp.float32, -bound1, bound1)
    b1 = jax.random.uniform(k_b1, (N_HIDDEN,), jnp.float32, -bound1, bound1)
    w2 = jax.random.uniform(k_w2, (N_PREDICTED, N_HIDDEN), jnp.float32, -bound2, bound2)
    b2 = jax.random.uniform(k_b2, (N_PREDICTED,), jnp.float32, -bound2, bound2)

    # Small batch of synthetic rolling-forecast windows (values ~ tens of kMW),
    # i.e. many `all_ts[t-336 : t+1]` slices stacked along the batch axis.
    B = 64
    ts_windows = 40000.0 + 10000.0 * jax.random.uniform(
        k_data, (B, N_FEATURES), jnp.float32)

    # Plain-JAX f32 reference (same math as the PyTorch forward, per row).
    x_ref = ts_windows / SCALE_POWER
    h_ref = jnp.maximum(x_ref @ w1.T + b1, 0.0)
    y_ref = SCALE_POWER * jnp.maximum(h_ref @ w2.T + b2, 0.0)

    # 1) f32 weights + f32 input: strict check of folding / transposes / padding.
    params_f32 = prepare_params(w1, b1, w2, b2, weight_dtype=jnp.float32)
    y_f32 = jax.block_until_ready(elecnn_forward_batched(ts_windows, params_f32))
    assert y_f32.shape == (B, N_PREDICTED)
    assert jnp.allclose(y_f32, y_ref, rtol=1e-4, atol=1.0), (
        "f32 max abs err", float(jnp.max(jnp.abs(y_f32 - y_ref))))

    # 2) bf16 weights + bf16 input (fast mem-bound default; input DMA halved):
    #    relaxed tolerance (dominant error is bf16 cast of ~5e4-scale inputs).
    params_bf16 = prepare_params(w1, b1, w2, b2, weight_dtype=jnp.bfloat16)
    y_bf16 = jax.block_until_ready(
        elecnn_forward_batched(ts_windows.astype(jnp.bfloat16), params_bf16))
    assert y_bf16.shape == (B, N_PREDICTED)
    assert jnp.allclose(y_bf16, y_ref, rtol=5e-2, atol=0.02 * SCALE_POWER), (
        "bf16 max abs err", float(jnp.max(jnp.abs(y_bf16 - y_ref))))

    # 3) bf16 weights + f32 input: the higher-accuracy knob from the review
    #    (keep activations f32, weights bf16; throughput unaffected, mem-bound).
    y_mix = jax.block_until_ready(elecnn_forward_batched(ts_windows, params_bf16))
    assert jnp.allclose(y_mix, y_ref, rtol=5e-2, atol=0.02 * SCALE_POWER), (
        "mixed max abs err", float(jnp.max(jnp.abs(y_mix - y_ref))))

    # 4) Single-window convenience path (one PyTorch forward-call equivalent);
    #    also exercises the batch-row padding branch (B=1 -> one 8-row block).
    y_one = jax.block_until_ready(elecnn_forward(ts_windows[0], params_bf16))
    assert y_one.shape == (N_PREDICTED,)

    print("KERNEL_OK")
</pallas_src>

<mosaic_0001>
module attributes {stable_mosaic.version = 11 : i64} {
  func.func @elecnn_kernel(%arg0: i32, %arg1: memref<32x337xf32, #tpu.memory_space<vmem>>, %arg2: memref<337x128xf32, #tpu.memory_space<vmem>>, %arg3: memref<1x128xf32, #tpu.memory_space<vmem>>, %arg4: memref<128x144xf32, #tpu.memory_space<vmem>>, %arg5: memref<1x144xf32, #tpu.memory_space<vmem>>, %arg6: memref<32x144xf32, #tpu.memory_space<vmem>>) attributes {dimension_semantics = [#tpu.dimension_semantics<parallel>], iteration_bounds = array<i64: 2>, scalar_prefetch = 0 : i64, scratch_operands = 0 : i64, tpu.core_type = #tpu.core_type<tc>, window_params = [{transform_indices = @transform_0, window_bounds = array<i64: 32, 337>}, {pipeline_mode = #tpu.pipeline_mode<synchronous>, transform_indices = @transform_1, window_bounds = array<i64: 337, 128>}, {pipeline_mode = #tpu.pipeline_mode<synchronous>, transform_indices = @transform_2, window_bounds = array<i64: 1, 128>}, {pipeline_mode = #tpu.pipeline_mode<synchronous>, transform_indices = @transform_3, window_bounds = array<i64: 128, 144>}, {pipeline_mode = #tpu.pipeline_mode<synchronous>, transform_indices = @transform_4, window_bounds = array<i64: 1, 144>}, {transform_indices = @transform_5, window_bounds = array<i64: 32, 144>}]} {
    %c0 = arith.constant 0 : index
    %c0_0 = arith.constant 0 : index
    %0 = vector.load %arg1[%c0, %c0_0] : memref<32x337xf32, #tpu.memory_space<vmem>>, vector<32x337xf32>
    %c0_1 = arith.constant 0 : index
    %c0_2 = arith.constant 0 : index
    %1 = vector.load %arg2[%c0_1, %c0_2] : memref<337x128xf32, #tpu.memory_space<vmem>>, vector<337x128xf32>
    %cst = arith.constant dense<0.000000e+00> : vector<32x128xf32>
    %2 = tpu.matmul %0, %1, %cst {dimension_numbers = #tpu.dot_dimension_numbers<[1], [0], [0], [1], [0, 0, 1, 1], [], []>} : vector<32x337xf32>, vector<337x128xf32>, vector<32x128xf32> -> vector<32x128xf32>
    %c0_3 = arith.constant 0 : index
    %c0_4 = arith.constant 0 : index
    %3 = vector.load %arg3[%c0_3, %c0_4] : memref<1x128xf32, #tpu.memory_space<vmem>>, vector<1x128xf32>
    %4 = vector.broadcast %3 : vector<1x128xf32> to vector<32x128xf32>
    %5 = arith.addf %2, %4 : vector<32x128xf32>
    %cst_5 = arith.constant 0.000000e+00 : f32
    %6 = vector.broadcast %cst_5 : f32 to vector<32x128xf32>
    %7 = arith.maximumf %5, %6 : vector<32x128xf32>
    %c0_6 = arith.constant 0 : index
    %c0_7 = arith.constant 0 : index
    %8 = vector.load %arg4[%c0_6, %c0_7] : memref<128x144xf32, #tpu.memory_space<vmem>>, vector<128x144xf32>
    %cst_8 = arith.constant dense<0.000000e+00> : vector<32x144xf32>
    %9 = tpu.matmul %7, %8, %cst_8 {dimension_numbers = #tpu.dot_dimension_numbers<[1], [0], [0], [1], [0, 0, 1, 1], [], []>} : vector<32x128xf32>, vector<128x144xf32>, vector<32x144xf32> -> vector<32x144xf32>
    %c0_9 = arith.constant 0 : index
    %c0_10 = arith.constant 0 : index
    %10 = vector.load %arg5[%c0_9, %c0_10] : memref<1x144xf32, #tpu.memory_space<vmem>>, vector<1x144xf32>
    %11 = vector.broadcast %10 : vector<1x144xf32> to vector<32x144xf32>
    %12 = arith.addf %9, %11 : vector<32x144xf32>
    %cst_11 = arith.constant 0.000000e+00 : f32
    %13 = vector.broadcast %cst_11 : f32 to vector<32x144xf32>
    %14 = arith.maximumf %12, %13 : vector<32x144xf32>
    %c0_12 = arith.constant 0 : index
    %c0_13 = arith.constant 0 : index
    %15 = vector.load %arg6[%c0_12, %c0_13] : memref<32x144xf32, #tpu.memory_space<vmem>>, vector<32x144xf32>
    tpu.vector_store %arg6[%c0_12, %c0_13], %14 {strides = array<i32>} : memref<32x144xf32, #tpu.memory_space<vmem>>, vector<32x144xf32>,
    return
  }
  func.func @transform_0(%arg0: i32) -> (i32, i32) {
    %c0_i32 = arith.constant 0 : i32
    %c0_i32_0 = arith.constant 0 : i32
    return %arg0, %c0_i32 : i32, i32
  }
  func.func @transform_1(%arg0: i32) -> (i32, i32) {
    %c0_i32 = arith.constant 0 : i32
    %c0_i32_0 = arith.constant 0 : i32
    %c0_i32_1 = arith.constant 0 : i32
    return %c0_i32, %c0_i32_0 : i32, i32
  }
  func.func @transform_2(%arg0: i32) -> (i32, i32) {
    %c0_i32 = arith.constant 0 : i32
    %c0_i32_0 = arith.constant 0 : i32
    %c0_i32_1 = arith.constant 0 : i32
    return %c0_i32, %c0_i32_0 : i32, i32
  }
  func.func @transform_3(%arg0: i32) -> (i32, i32) {
    %c0_i32 = arith.constant 0 : i32
    %c0_i32_0 = arith.constant 0 : i32
    %c0_i32_1 = arith.constant 0 : i32
    return %c0_i32, %c0_i32_0 : i32, i32
  }
  func.func @transform_4(%arg0: i32) -> (i32, i32) {
    %c0_i32 = arith.constant 0 : i32
    %c0_i32_0 = arith.constant 0 : i32
    %c0_i32_1 = arith.constant 0 : i32
    return %c0_i32, %c0_i32_0 : i32, i32
  }
  func.func @transform_5(%arg0: i32) -> (i32, i32) {
    %c0_i32 = arith.constant 0 : i32
    %c0_i32_0 = arith.constant 0 : i32
    return %arg0, %c0_i32 : i32, i32
  }
}

</mosaic_0001>

<llo_original>
// kernel: elecnn_forward_batched.1
$region0: #{elecnn_forward_batched.1}
  #allocation0 [shape = 'u32[]', space=smem, size = 0x4, offset = 0x4, fixed_abs, tag = 'smem constant byte address 0x4 - core index']
  #allocation1 [shape = 'u32[144,128]{1,0:T(1,128)}', space=vmem, size = 0x12000, scoped, tag = 'internal scratch']
  %s0 = inlined_call_operand.hbm [shape: f32[64,337], index: 0, kind: input, shape index: {}]
  %s1 = inlined_call_operand.vmem [shape: f32[337,128], index: 1, kind: input, shape index: {}]
  %s2 = inlined_call_operand.vmem [shape: f32[1,128], index: 2, kind: input, shape index: {}]
  %s3 = inlined_call_operand.vmem [shape: f32[128,144], index: 3, kind: input, shape index: {}]
  %s4 = inlined_call_operand.vmem [shape: f32[1,144], index: 4, kind: input, shape index: {}]
  %s5 = inlined_call_operand.hbm [shape: f32[64,144], index: 5, kind: output, shape index: {}]
  %s6 = sld [smem:[#allocation0]]
  $region57: #{elecnn_forward_batched.1} parent=0
    _
  %s8 = ssub.s32 1, %s6
  %s9 = scalar_select 0, %s8, %s6
  $region1: #{elecnn_forward_batched.1} parent=0
    #allocation2 [shape = 'u8[98304]{0}', space=vmem, size = 0x18000, scoped, tag = 'input window, operand 0']
    #allocation3 [shape = 's32[2]{0}', space=sflag, size = 0x8, scoped, tag = 'scoped memory for elecnn_forward_batched.1']
    #allocation4 [shape = 's32[2]{0}', space=sflag, size = 0x8, scoped, tag = 'scoped memory for elecnn_forward_batched.1']
    #allocation5 [shape = 'u8[65536]{0}', space=vmem, size = 0x10000, scoped, tag = 'output window, operand 0']
    %10 = vsyncpa [#allocation3], 0
    %s11 = scalar_lea.sflag [#allocation3], 1
    %12 = vsyncpa %s11, 0
    %13 = vsyncpa [#allocation4], 0
    %s14 = scalar_lea.sflag [#allocation4], 1
    %15 = vsyncpa %s14, 0
    loop: start=0, step=1, limit=4
    $region2: #{elecnn_forward_batched.1} parent=1 // loop_pre_header
      _
    $region3: #{elecnn_forward_batched.1} parent=1 // loop_header
      %s17 = sphi 0, %s21
      %p18 = scmp.ge.s32.totalorder %s17, 4
      %s27 = sphi 0, %s29
      %s30 = sphi 0, %s27
      %s31 = sphi 0, %s30
      %s47 = sphi 0, %s31
      %s51 = sphi 0, %s51
      %s53 = sphi 0, %s51
      %s54 = sphi 0, %s53
      %s68 = sphi 0, %s54
      %s72 = sphi 0, %s72
      %s74 = sphi 0, %s72
      %s75 = sphi 0, %s74
      %s89 = sphi 0, %s75
      %s93 = sphi 0, %s93
      %s95 = sphi 0, %s93
      %s96 = sphi 0, %s95
      %s110 = sphi 0, %s96
      %s114 = sphi 0, %s114
      %s116 = sphi 0, %s114
      %s117 = sphi 0, %s116
      %s131 = sphi 0, %s117
      %s137 = sphi 0, %s139
      %s140 = sphi 0, %s137
      %s141 = sphi 0, %s140
      %s157 = sphi 0, %s141
    $region4: #{elecnn_forward_batched.1} parent=1 // loop_header_branch
      %20 = sbr.rel (%p18) target = $region8
    $region5: #{elecnn_forward_batched.1} parent=1 // loop_body
      %s22 = ssub.s32 %s17, 1
      %s23 = ssub.s32 %s17, 2
      %s24 = sadd.s32 %s17, 1
      %s25 = ssub.s32 %s17, %s24
      %p26 = scmp.eq.s32.totalorder %s25, 0
      %s28 = sadd.s32 %s27, 1
      %s29 = scalar_select %p26, %s27, %s28
      %p32 = pneg %p26
      %p33 = scmp.eq.s32.totalorder %s17, 1
      %p34 = por %p32, %p33
      %p35 = scmp.ne.s32.totalorder %s27, %s30
      %p36 = scmp.eq.s32.totalorder %s17, 0
      %p37 = por %p35, %p36
      %p38 = scmp.ne.s32.totalorder %s27, %s30
      %p39 = scmp.eq.s32.totalorder %s22, 1
      %p40 = por %p38, %p39
      %p41 = scmp.ne.s32.totalorder %s30, %s31
      %p42 = scmp.eq.s32.totalorder %s22, 0
      %p43 = por %p41, %p42
      %p44 = scmp.ne.s32.totalorder %s30, %s31
      %p45 = scmp.eq.s32.totalorder %s23, 1
      %p46 = por %p44, %p45
      %p48 = scmp.ne.s32.totalorder %s31, %s47
      %p49 = scmp.eq.s32.totalorder %s23, 0
      %p50 = por %p48, %p49
      %s52 = sadd.s32 %s51, 1
      %p55 = scmp.eq.s32.totalorder %s17, 1
      %p56 = scmp.ne.s32.totalorder %s51, %s53
      %p57 = scmp.eq.s32.totalorder %s17, 0
      %p58 = por %p56, %p57
      %p59 = scmp.ne.s32.totalorder %s51, %s53
      %p60 = scmp.eq.s32.totalorder %s22, 1
      %p61 = por %p59, %p60
      %p62 = scmp.ne.s32.totalorder %s53, %s54
      %p63 = scmp.eq.s32.totalorder %s22, 0
      %p64 = por %p62, %p63
      %p65 = scmp.ne.s32.totalorder %s53, %s54
      %p66 = scmp.eq.s32.totalorder %s23, 1
      %p67 = por %p65, %p66
      %p69 = scmp.ne.s32.totalorder %s54, %s68
      %p70 = scmp.eq.s32.totalorder %s23, 0
      %p71 = por %p69, %p70
      %s73 = sadd.s32 %s72, 1
      %p76 = scmp.eq.s32.totalorder %s17, 1
      %p77 = scmp.ne.s32.totalorder %s72, %s74
      %p78 = scmp.eq.s32.totalorder %s17, 0
      %p79 = por %p77, %p78
      %p80 = scmp.ne.s32.totalorder %s72, %s74
      %p81 = scmp.eq.s32.totalorder %s22, 1
      %p82 = por %p80, %p81
      %p83 = scmp.ne.s32.totalorder %s74, %s75
      %p84 = scmp.eq.s32.totalorder %s22, 0
      %p85 = por %p83, %p84
      %p86 = scmp.ne.s32.totalorder %s74, %s75
      %p87 = scmp.eq.s32.totalorder %s23, 1
      %p88 = por %p86, %p87
      %p90 = scmp.ne.s32.totalorder %s75, %s89
      %p91 = scmp.eq.s32.totalorder %s23, 0
      %p92 = por %p90, %p91
      %s94 = sadd.s32 %s93, 1
      %p97 = scmp.eq.s32.totalorder %s17, 1
      %p98 = scmp.ne.s32.totalorder %s93, %s95
      %p99 = scmp.eq.s32.totalorder %s17, 0
      %p100 = por %p98, %p99
      %p101 = scmp.ne.s32.totalorder %s93, %s95
      %p102 = scmp.eq.s32.totalorder %s22, 1
      %p103 = por %p101, %p102
      %p104 = scmp.ne.s32.totalorder %s95, %s96
      %p105 = scmp.eq.s32.totalorder %s22, 0
      %p106 = por %p104, %p105
      %p107 = scmp.ne.s32.totalorder %s95, %s96
      %p108 = scmp.eq.s32.totalorder %s23, 1
      %p109 = por %p107, %p108
      %p111 = scmp.ne.s32.totalorder %s96, %s110
      %p112 = scmp.eq.s32.totalorder %s23, 0
      %p113 = por %p111, %p112
      %s115 = sadd.s32 %s114, 1
      %p118 = scmp.eq.s32.totalorder %s17, 1
      %p119 = scmp.ne.s32.totalorder %s114, %s116
      %p120 = scmp.eq.s32.totalorder %s17, 0
      %p121 = por %p119, %p120
      %p122 = scmp.ne.s32.totalorder %s114, %s116
      %p123 = scmp.eq.s32.totalorder %s22, 1
      %p124 = por %p122, %p123
      %p125 = scmp.ne.s32.totalorder %s116, %s117
      %p126 = scmp.eq.s32.totalorder %s22, 0
      %p127 = por %p125, %p126
      %p128 = scmp.ne.s32.totalorder %s116, %s117
      %p129 = scmp.eq.s32.totalorder %s23, 1
      %p130 = por %p128, %p129
      %p132 = scmp.ne.s32.totalorder %s117, %s131
      %p133 = scmp.eq.s32.totalorder %s23, 0
      %p134 = por %p132, %p133
      %s135 = ssub.s32 %s17, %s24
      %p136 = scmp.eq.s32.totalorder %s135, 0
      %s138 = sadd.s32 %s137, 1
      %s139 = scalar_select %p136, %s137, %s138
      %p142 = pneg %p136
      %p143 = scmp.eq.s32.totalorder %s17, 1
      %p144 = por %p142, %p143
      %p145 = scmp.ne.s32.totalorder %s137, %s140
      %p146 = scmp.eq.s32.totalorder %s17, 0
      %p147 = por %p145, %p146
      %p148 = scmp.ne.s32.totalorder %s137, %s140
      %p149 = scmp.eq.s32.totalorder %s22, 1
      %p150 = por %p148, %p149
      %p151 = scmp.ne.s32.totalorder %s140, %s141
      %p152 = scmp.eq.s32.totalorder %s22, 0
      %p153 = por %p151, %p152
      %p154 = scmp.ne.s32.totalorder %s140, %s141
      %p155 = scmp.eq.s32.totalorder %s23, 1
      %p156 = por %p154, %p155
      %p158 = scmp.ne.s32.totalorder %s141, %s157
      %p159 = scmp.eq.s32.totalorder %s23, 0
      %p160 = por %p158, %p159
      %p161 = scmp.le.s32.totalorder 1, %s17
      %p162 = scmp.lt.s32.totalorder %s17, 3
      %p163 = pnand %p161, %p162
      %p164 = pneg %p163
      // Predicated region
      $region9: #{elecnn_forward_batched.1} parent=5 // pred_check
        _
      $region10: #{elecnn_forward_batched.1} parent=5 // pred_check_branch
        %166 = sbr.rel (%p163) target = $region12
      $region11: #{elecnn_forward_batched.1} parent=5 // pred_region
        %s167 = ssub.s32 %s17, 1
        // Predicated region
        $region13: #{elecnn_forward_batched.1} parent=11 // pred_check
          %p168 = pneg %p64
        $region14: #{elecnn_forward_batched.1} parent=11 // pred_check_branch
          %170 = sbr.rel (%p168) target = $region16
        $region15: #{elecnn_forward_batched.1} parent=11 // pred_region
          _
        $region16: #{elecnn_forward_batched.1} parent=11 // pred_fallthru
          _
        // Predicated region
        $region17: #{elecnn_forward_batched.1} parent=11 // pred_check
          %p171 = pneg %p85
        $region18: #{elecnn_forward_batched.1} parent=11 // pred_check_branch
          %173 = sbr.rel (%p171) target = $region20
        $region19: #{elecnn_forward_batched.1} parent=11 // pred_region
          _
        $region20: #{elecnn_forward_batched.1} parent=11 // pred_fallthru
          _
        // Predicated region
        $region21: #{elecnn_forward_batched.1} parent=11 // pred_check
          %p174 = pneg %p106
        $region22: #{elecnn_forward_batched.1} parent=11 // pred_check_branch
          %176 = sbr.rel (%p174) target = $region24
        $region23: #{elecnn_forward_batched.1} parent=11 // pred_region
          _
        $region24: #{elecnn_forward_batched.1} parent=11 // pred_fallthru
          _
        // Predicated region
        $region25: #{elecnn_forward_batched.1} parent=11 // pred_check
          %p177 = pneg %p127
        $region26: #{elecnn_forward_batched.1} parent=11 // pred_check_branch
          %179 = sbr.rel (%p177) target = $region28
        $region27: #{elecnn_forward_batched.1} parent=11 // pred_region
          _
        $region28: #{elecnn_forward_batched.1} parent=11 // pred_fallthru
          _
      $region12: #{elecnn_forward_batched.1} parent=5 // pred_fallthru
        _
      %p180 = scmp.lt.s32.totalorder %s17, 2
      // Predicated region
      $region29: #{elecnn_forward_batched.1} parent=5 // pred_check
        %p181 = pneg %p180
      $region30: #{elecnn_forward_batched.1} parent=5 // pred_check_branch
        %183 = sbr.rel (%p181) target = $region32
      $region31: #{elecnn_forward_batched.1} parent=5 // pred_region
        // Predicated region
        $region33: #{elecnn_forward_batched.1} parent=31 // pred_check
          %p184 = pneg %p37
        $region34: #{elecnn_forward_batched.1} parent=31 // pred_check_branch
          %186 = sbr.rel (%p184) target = $region36
        $region35: #{elecnn_forward_batched.1} parent=31 // pred_region
          %s187 = sand.u32 %s27, 1
          %s188 = scalar_lea.sflag [#allocation3], %s187
          %s189 = sand.u32 %s27, 1
          %s190 = smul.addr %s189, 96
          %s191 = scalar_lea.vmem [#allocation2], %s190
          %s192 = smul.u32 4, %s17
          %s194 = ssub.s32 1536, 1536
          %195 = vsyncadd %s188, %s194
          %s196 = smul.addr %s192, 3
          %s197 = smul.addr %s196, 128
          %s198 = scalar_lea.hbm %s0, %s197
          %s199 = sshll.u32 %s191, 4
          %s200 = int_to_ptr.vmem [resolvable:$true] %s199
          %205 = dma.hbm_to_vmem [thread:$0]  %s198, 1536, %s200, %s188, 384, 384, 24
        $region36: #{elecnn_forward_batched.1} parent=31 // pred_fallthru
          _
      $region32: #{elecnn_forward_batched.1} parent=5 // pred_fallthru
        _
      %p206 = scmp.le.s32.totalorder 1, %s17
      %p207 = scmp.lt.s32.totalorder %s17, 3
      %p208 = pnand %p206, %p207
      %p209 = pneg %p208
      // Predicated region
      $region37: #{elecnn_forward_batched.1} parent=5 // pred_check
        _
      $region38: #{elecnn_forward_batched.1} parent=5 // pred_check_branch
        %211 = sbr.rel (%p208) target = $region40
      $region39: #{elecnn_forward_batched.1} parent=5 // pred_region
        %s212 = ssub.s32 %s17, 1
        %s213 = sand.u32 %s30, 1
        %s214 = scalar_lea.sflag [#allocation3], %s213
        %s215 = sand.u32 %s30, 1
        %s216 = smul.addr %s215, 96
        %s217 = scalar_lea.vmem [#allocation2], %s216
        // Predicated region
        $region41: #{elecnn_forward_batched.1} parent=39 // pred_check
          %p218 = pneg %p43
        $region42: #{elecnn_forward_batched.1} parent=39 // pred_check_branch
          %220 = sbr.rel (%p218) target = $region44
        $region43: #{elecnn_forward_batched.1} parent=39 // pred_region
          %221 = dma.done %s214, 1536
        $region44: #{elecnn_forward_batched.1} parent=39 // pred_fallthru
          _
        %s222 = sand.u32 %s30, 1
        %s223 = scalar_lea.sflag [#allocation3], %s222
        %s224 = sand.u32 %s30, 1
        %s225 = smul.addr %s224, 96
        %s226 = scalar_lea.vmem [#allocation2], %s225
        %p227 = pneg %p43
        %p228 = pneg %p40
        %p229 = pneg %p64
        %p230 = pneg %p61
        %p231 = pneg %p85
        %p232 = pneg %p82
        %p233 = pneg %p106
        %p234 = pneg %p103
        %p235 = pneg %p127
        %p236 = pneg %p124
        %p237 = pneg %p153
        %p238 = pneg %p150
        %s239 = sand.u32 %s140, 1
        %s240 = scalar_lea.sflag [#allocation4], %s239
        %s241 = sand.u32 %s140, 1
        %s242 = smul.addr %s241, 64
        %s243 = scalar_lea.vmem [#allocation5], %s242
        %s244 = smul.u32 4, %s22
        %s245 = smul.u32 4, %s22
        %v246 = vld [vmem:[%s217] sm:$0xff]
        %v247 = vld [vmem:[%s217 + $0x8] sm:$0xff]
        %v248 = vld [vmem:[%s217 + $0x10] sm:$0xff]
        %v249 = vld [vmem:[%s217 + $0x18] sm:$0xff]
        %v250 = vld [vmem:[%s217 + $0x20] sm:$0xff]
        %v251 = vld [vmem:[%s217 + $0x28] sm:$0xff]
        %v252 = vld [vmem:[%s217 + $0x30] sm:$0xff]
        %v253 = vld [vmem:[%s217 + $0x38] sm:$0xff]
        %v254 = vld [vmem:[%s217 + $0x40] sm:$0xff]
        %v255 = vld [vmem:[%s217 + $0x48] sm:$0xff]
        %v256 = vld [vmem:[%s217 + $0x50] sm:$0xff]
        %v257 = vld [vmem:[%s217 + $0x58] sm:$0xff]
        %v258 = vld [vmem:[%s1] sm:$0xff]
        %v259 = vld [vmem:[%s1 + $0x8] sm:$0xff]
        %v260 = vld [vmem:[%s1 + $0x10] sm:$0xff]
        %v261 = vld [vmem:[%s1 + $0x18] sm:$0xff]
        %v262 = vld [vmem:[%s1 + $0x20] sm:$0xff]
        %v263 = vld [vmem:[%s1 + $0x28] sm:$0xff]
        %v264 = vld [vmem:[%s1 + $0x30] sm:$0xff]
        %v265 = vld [vmem:[%s1 + $0x38] sm:$0xff]
        %v266 = vld [vmem:[%s1 + $0x40] sm:$0xff]
        %v267 = vld [vmem:[%s1 + $0x48] sm:$0xff]
        %v268 = vld [vmem:[%s1 + $0x50] sm:$0xff]
        %v269 = vld [vmem:[%s1 + $0x58] sm:$0xff]
        %v270 = vld [vmem:[%s1 + $0x60] sm:$0xff]
        %v271 = vld [vmem:[%s1 + $0x68] sm:$0xff]
        %v272 = vld [vmem:[%s1 + $0x70] sm:$0xff]
        %v273 = vld [vmem:[%s1 + $0x78] sm:$0xff]
        %v274 = vld [vmem:[%s1 + $0x80] sm:$0xff]
        %v275 = vld [vmem:[%s1 + $0x88] sm:$0xff]
        %v276 = vld [vmem:[%s1 + $0x90] sm:$0xff]
        %v277 = vld [vmem:[%s1 + $0x98] sm:$0xff]
        %v278 = vld [vmem:[%s1 + $0xa0] sm:$0xff]
        %v279 = vld [vmem:[%s1 + $0xa8] sm:$0xff]
        %v280 = vld [vmem:[%s1 + $0xb0] sm:$0xff]
        %v281 = vld [vmem:[%s1 + $0xb8] sm:$0xff]
        %v282 = vld [vmem:[%s1 + $0xc0] sm:$0xff]
        %v283 = vld [vmem:[%s1 + $0xc8] sm:$0xff]
        %v284 = vld [vmem:[%s1 + $0xd0] sm:$0xff]
        %v285 = vld [vmem:[%s1 + $0xd8] sm:$0xff]
        %v286 = vld [vmem:[%s1 + $0xe0] sm:$0xff]
        %v287 = vld [vmem:[%s1 + $0xe8] sm:$0xff]
        %v288 = vld [vmem:[%s1 + $0xf0] sm:$0xff]
        %v289 = vld [vmem:[%s1 + $0xf8] sm:$0xff]
        %v290 = vld [vmem:[%s1 + $0x100] sm:$0xff]
        %v291 = vld [vmem:[%s1 + $0x108] sm:$0xff]
        %v292 = vld [vmem:[%s1 + $0x110] sm:$0xff]
        %v293 = vld [vmem:[%s1 + $0x118] sm:$0xff]
        %v294 = vld [vmem:[%s1 + $0x120] sm:$0xff]
        %v295 = vld [vmem:[%s1 + $0x128] sm:$0xff]
        %v296 = vld [vmem:[%s1 + $0x130] sm:$0xff]
        %v297 = vld [vmem:[%s1 + $0x138] sm:$0xff]
        %v298 = vld [vmem:[%s1 + $0x140] sm:$0xff]
        %v299 = vld [vmem:[%s1 + $0x148] sm:$0xff]
        %v300 = vld [vmem:[%s1 + $0x150] sm:$0x1]
        %v301 = vld [vmem:[%s2] sm:$0x1]
        %v303 = vlaneseq
        %v304 = vshrl.u32 %v303, 7
        %v305 = vsub.s32 0, %v304
        %v306 = vrot.slane %v301, %v305
        %vm308 = vcmask 662528
        %v310 = vsel %vm308, %v248, 0
        %v313 = vsel %vm308, %v251, 0
        %v316 = vsel %vm308, %v254, 0
        %v319 = vsel %vm308, %v257, 0
        %vm321 = vcmask 1040384
        %v323 = vsel %vm321, %v300, 0
        %325 = vmatprep.subr.mxu0 0.0
        %326 = vmatpush1.msra.mxu0 %v273
        %327 = vmatprep.subr.mxu0 0.0
        %328 = vmatpush1.msra.mxu0 %v272
        %329 = vmatprep.subr.mxu0 0.0
        %330 = vmatpush1.msra.mxu0 %v271
        %331 = vmatprep.subr.mxu0 0.0
        %332 = vmatpush1.msra.mxu0 %v270
        %333 = vmatprep.subr.mxu0 0.0
        %334 = vmatpush1.msra.mxu0 %v269
        %335 = vmatprep.subr.mxu0 0.0
        %336 = vmatpush1.msra.mxu0 %v268
        %337 = vmatprep.subr.mxu0 0.0
        %338 = vmatpush1.msra.mxu0 %v267
        %339 = vmatprep.subr.mxu0 0.0
        %340 = vmatpush1.msra.mxu0 %v266
        %341 = vmatprep.subr.mxu0 0.0
        %342 = vmatpush1.msra.mxu0 %v265
        %343 = vmatprep.subr.mxu0 0.0
        %344 = vmatpush1.msra.mxu0 %v264
        %345 = vmatprep.subr.mxu0 0.0
        %346 = vmatpush1.msra.mxu0 %v263
        %347 = vmatprep.subr.mxu0 0.0
        %348 = vmatpush1.msra.mxu0 %v262
        %349 = vmatprep.subr.mxu0 0.0
        %350 = vmatpush1.msra.mxu0 %v261
        %351 = vmatprep.subr.mxu0 0.0
        %352 = vmatpush1.msra.mxu0 %v260
        %353 = vmatprep.subr.mxu0 0.0
        %354 = vmatpush1.msra.mxu0 %v259
        %355 = vmatprep.subr.mxu0 0.0
        %356 = vmatpush1.msra.mxu0 %v258
        %357 = vmatprep.subr.mxu0 0.0
        %358 = vmatpush2.msra.mxu0 %v289
        %359 = vmatprep.subr.mxu0 0.0
        %360 = vmatpush2.msra.mxu0 %v288
        %361 = vmatprep.subr.mxu0 0.0
        %362 = vmatpush2.msra.mxu0 %v287
        %363 = vmatprep.subr.mxu0 0.0
        %364 = vmatpush2.msra.mxu0 %v286
        %365 = vmatprep.subr.mxu0 0.0
        %366 = vmatpush2.msra.mxu0 %v285
        %367 = vmatprep.subr.mxu0 0.0
        %368 = vmatpush2.msra.mxu0 %v284
        %369 = vmatprep.subr.mxu0 0.0
        %370 = vmatpush2.msra.mxu0 %v283
        %371 = vmatprep.subr.mxu0 0.0
        %372 = vmatpush2.msra.mxu0 %v282
        %373 = vmatprep.subr.mxu0 0.0
        %374 = vmatpush2.msra.mxu0 %v281
        %375 = vmatprep.subr.mxu0 0.0
        %376 = vmatpush2.msra.mxu0 %v280
        %377 = vmatprep.subr.mxu0 0.0
        %378 = vmatpush2.msra.mxu0 %v279
        %379 = vmatprep.subr.mxu0 0.0
        %380 = vmatpush2.msra.mxu0 %v278
        %381 = vmatprep.subr.mxu0 0.0
        %382 = vmatpush2.msra.mxu0 %v277
        %383 = vmatprep.subr.mxu0 0.0
        %384 = vmatpush2.msra.mxu0 %v276
        %385 = vmatprep.subr.mxu0 0.0
        %386 = vmatpush2.msra.mxu0 %v275
        %387 = vmatprep.subr.mxu0 0.0
        %388 = vmatpush2.msra.mxu0 %v274
        %389 = vmatprep.mubr.f32.mxu0 %v247
        %390 = vmatmul.mubr.f32.gmra.mxu0 %v246
        %v391 = vpop.f32.mrf.mxu0
        %v392 = vadd.f32 %v306, %v391
        %v393 = vpop.f32.mrf.mxu0
        %394 = vmatprep.mubr.f32.mxu0 %v250
        %395 = vmatmul.mubr.f32.gmra.mxu0 %v249
        %v396 = vpop.f32.mrf.mxu0
        %v397 = vadd.f32 %v306, %v396
        %v398 = vpop.f32.mrf.mxu0
        %399 = vmatprep.mubr.f32.mxu0 %v253
        %400 = vmatmul.mubr.f32.gmra.mxu0 %v252
        %v401 = vpop.f32.mrf.mxu0
        %v402 = vadd.f32 %v306, %v401
        %v403 = vpop.f32.mrf.mxu0
        %404 = vmatprep.mubr.f32.mxu0 %v256
        %405 = vmatmul.mubr.f32.gmra.mxu0 %v255
        %v406 = vpop.f32.mrf.mxu0
        %v407 = vadd.f32 %v306, %v406
        %v408 = vpop.f32.mrf.mxu0
        %409 = vdwg.mxu0
        %410 = vmatprep.subr.mxu0 0.0
        %411 = vmatpush1.msra.mxu0 0.0
        %412 = vmatprep.subr.mxu0 0.0
        %413 = vmatpush1.msra.mxu0 0.0
        %414 = vmatprep.subr.mxu0 0.0
        %415 = vmatpush1.msra.mxu0 0.0
        %416 = vmatprep.subr.mxu0 0.0
        %417 = vmatpush1.msra.mxu0 0.0
        %418 = vmatprep.subr.mxu0 0.0
        %419 = vmatpush1.msra.mxu0 0.0
        %420 = vmatprep.subr.mxu0 0.0
        %421 = vmatpush1.msra.mxu0 %v323
        %422 = vmatprep.subr.mxu0 0.0
        %423 = vmatpush1.msra.mxu0 %v299
        %424 = vmatprep.subr.mxu0 0.0
        %425 = vmatpush1.msra.mxu0 %v298
        %426 = vmatprep.subr.mxu0 0.0
        %427 = vmatpush1.msra.mxu0 %v297
        %428 = vmatprep.subr.mxu0 0.0
        %429 = vmatpush1.msra.mxu0 %v296
        %430 = vmatprep.subr.mxu0 0.0
        %431 = vmatpush1.msra.mxu0 %v295
        %432 = vmatprep.subr.mxu0 0.0
        %433 = vmatpush1.msra.mxu0 %v294
        %434 = vmatprep.subr.mxu0 0.0
        %435 = vmatpush1.msra.mxu0 %v293
        %436 = vmatprep.subr.mxu0 0.0
        %437 = vmatpush1.msra.mxu0 %v292
        %438 = vmatprep.subr.mxu0 0.0
        %439 = vmatpush1.msra.mxu0 %v291
        %440 = vmatprep.subr.mxu0 0.0
        %441 = vmatpush1.msra.mxu0 %v290
        %442 = vmatprep.subr.mxu0 0.0
        %443 = vmatpush2.msra.mxu0 0.0
        %444 = vmatprep.subr.mxu0 0.0
        %445 = vmatpush2.msra.mxu0 0.0
        %446 = vmatprep.subr.mxu0 0.0
        %447 = vmatpush2.msra.mxu0 0.0
        %448 = vmatprep.subr.mxu0 0.0
        %449 = vmatpush2.msra.mxu0 0.0
        %450 = vmatprep.subr.mxu0 0.0
        %451 = vmatpush2.msra.mxu0 0.0
        %452 = vmatprep.subr.mxu0 0.0
        %453 = vmatpush2.msra.mxu0 0.0
        %454 = vmatprep.subr.mxu0 0.0
        %455 = vmatpush2.msra.mxu0 0.0
        %456 = vmatprep.subr.mxu0 0.0
        %457 = vmatpush2.msra.mxu0 0.0
        %458 = vmatprep.subr.mxu0 0.0
        %459 = vmatpush2.msra.mxu0 0.0
        %460 = vmatprep.subr.mxu0 0.0
        %461 = vmatpush2.msra.mxu0 0.0
        %462 = vmatprep.subr.mxu0 0.0
        %463 = vmatpush2.msra.mxu0 0.0
        %464 = vmatprep.subr.mxu0 0.0
        %465 = vmatpush2.msra.mxu0 0.0
        %466 = vmatprep.subr.mxu0 0.0
        %467 = vmatpush2.msra.mxu0 0.0
        %468 = vmatprep.subr.mxu0 0.0
        %469 = vmatpush2.msra.mxu0 0.0
        %470 = vmatprep.subr.mxu0 0.0
        %471 = vmatpush2.msra.mxu0 0.0
        %472 = vmatprep.subr.mxu0 0.0
        %473 = vmatpush2.msra.mxu0 0.0
        %474 = vmatprep.mubr.f32.mxu0 0.0
        %475 = vmatmul.mubr.f32.gmra.mxu0 %v310
        %v476 = vpop.f32.mrf.mxu0
        %v477 = vadd.f32 %v392, %v476
        %v478 = vpop.f32.mrf.mxu0
        %479 = vmatprep.mubr.f32.mxu0 0.0
        %480 = vmatmul.mubr.f32.gmra.mxu0 %v313
        %v481 = vpop.f32.mrf.mxu0
        %v482 = vadd.f32 %v397, %v481
        %v483 = vpop.f32.mrf.mxu0
        %484 = vmatprep.mubr.f32.mxu0 0.0
        %485 = vmatmul.mubr.f32.gmra.mxu0 %v316
        %v486 = vpop.f32.mrf.mxu0
        %v487 = vadd.f32 %v402, %v486
        %v488 = vpop.f32.mrf.mxu0
        %489 = vmatprep.mubr.f32.mxu0 0.0
        %490 = vmatmul.mubr.f32.gmra.mxu0 %v319
        %v491 = vpop.f32.mrf.mxu0
        %v492 = vadd.f32 %v407, %v491
        %v493 = vpop.f32.mrf.mxu0
        %494 = vdwg.mxu0
        %v495 = vmax.f32 %v477, 0.0
        %v496 = vmax.f32 %v482, 0.0
        %v497 = vmax.f32 %v487, 0.0
        %v498 = vmax.f32 %v492, 0.0
        %v499 = vld [vmem:[%s3] sm:$0xff]
        %v500 = vld [vmem:[%s3 + $0x8] sm:$0xff]
        %v501 = vld [vmem:[%s3 + $0x10] sm:$0xff]
        %v502 = vld [vmem:[%s3 + $0x18] sm:$0xff]
        %v503 = vld [vmem:[%s3 + $0x20] sm:$0xff]
        %v504 = vld [vmem:[%s3 + $0x28] sm:$0xff]
        %v505 = vld [vmem:[%s3 + $0x30] sm:$0xff]
        %v506 = vld [vmem:[%s3 + $0x38] sm:$0xff]
        %v507 = vld [vmem:[%s3 + $0x40] sm:$0xff]
        %v508 = vld [vmem:[%s3 + $0x48] sm:$0xff]
        %v509 = vld [vmem:[%s3 + $0x50] sm:$0xff]
        %v510 = vld [vmem:[%s3 + $0x58] sm:$0xff]
        %v511 = vld [vmem:[%s3 + $0x60] sm:$0xff]
        %v512 = vld [vmem:[%s3 + $0x68] sm:$0xff]
        %v513 = vld [vmem:[%s3 + $0x70] sm:$0xff]
        %v514 = vld [vmem:[%s3 + $0x78] sm:$0xff]
        %v515 = vld [vmem:[%s3 + $0x80] sm:$0xff]
        %v516 = vld [vmem:[%s3 + $0x88] sm:$0xff]
        %v517 = vld [vmem:[%s3 + $0x90] sm:$0xff]
        %v518 = vld [vmem:[%s3 + $0x98] sm:$0xff]
        %v519 = vld [vmem:[%s3 + $0xa0] sm:$0xff]
        %v520 = vld [vmem:[%s3 + $0xa8] sm:$0xff]
        %v521 = vld [vmem:[%s3 + $0xb0] sm:$0xff]
        %v522 = vld [vmem:[%s3 + $0xb8] sm:$0xff]
        %v523 = vld [vmem:[%s3 + $0xc0] sm:$0xff]
        %v524 = vld [vmem:[%s3 + $0xc8] sm:$0xff]
        %v525 = vld [vmem:[%s3 + $0xd0] sm:$0xff]
        %v526 = vld [vmem:[%s3 + $0xd8] sm:$0xff]
        %v527 = vld [vmem:[%s3 + $0xe0] sm:$0xff]
        %v528 = vld [vmem:[%s3 + $0xe8] sm:$0xff]
        %v529 = vld [vmem:[%s3 + $0xf0] sm:$0xff]
        %v530 = vld [vmem:[%s3 + $0xf8] sm:$0xff]
        %v531 = vld [vmem:[%s4] sm:$0x3]
        %v533 = vlaneseq
        %v534 = vshrl.u32 %v533, 7
        %v535 = vsub.s32 0, %v534
        %v536 = vrot.slane %v531, %v535
        %v537 = vlaneseq
        %v538 = vshrl.u32 %v537, 7
        %v539 = vsub.s32 1, %v538
        %v540 = vrot.slane %v531, %v539
        %543 = vmatprep.subr.mxu0 %v530
        %544 = vmatpush1.msra.mxu0 %v529
        %545 = vmatprep.subr.mxu0 %v528
        %546 = vmatpush1.msra.mxu0 %v527
        %547 = vmatprep.subr.mxu0 %v526
        %548 = vmatpush1.msra.mxu0 %v525
        %549 = vmatprep.subr.mxu0 %v524
        %550 = vmatpush1.msra.mxu0 %v523
        %551 = vmatprep.subr.mxu0 %v522
        %552 = vmatpush1.msra.mxu0 %v521
        %553 = vmatprep.subr.mxu0 %v520
        %554 = vmatpush1.msra.mxu0 %v519
        %555 = vmatprep.subr.mxu0 %v518
        %556 = vmatpush1.msra.mxu0 %v517
        %557 = vmatprep.subr.mxu0 %v516
        %558 = vmatpush1.msra.mxu0 %v515
        %559 = vmatprep.subr.mxu0 %v514
        %560 = vmatpush1.msra.mxu0 %v513
        %561 = vmatprep.subr.mxu0 %v512
        %562 = vmatpush1.msra.mxu0 %v511
        %563 = vmatprep.subr.mxu0 %v510
        %564 = vmatpush1.msra.mxu0 %v509
        %565 = vmatprep.subr.mxu0 %v508
        %566 = vmatpush1.msra.mxu0 %v507
        %567 = vmatprep.subr.mxu0 %v506
        %568 = vmatpush1.msra.mxu0 %v505
        %569 = vmatprep.subr.mxu0 %v504
        %570 = vmatpush1.msra.mxu0 %v503
        %571 = vmatprep.subr.mxu0 %v502
        %572 = vmatpush1.msra.mxu0 %v501
        %573 = vmatprep.subr.mxu0 %v500
        %574 = vmatpush1.msra.mxu0 %v499
        %575 = vmatprep.subr.mxu0 0.0
        %576 = vmatpush2.msra.mxu0 0.0
        %577 = vmatprep.subr.mxu0 0.0
        %578 = vmatpush2.msra.mxu0 0.0
        %579 = vmatprep.subr.mxu0 0.0
        %580 = vmatpush2.msra.mxu0 0.0
        %581 = vmatprep.subr.mxu0 0.0
        %582 = vmatpush2.msra.mxu0 0.0
        %583 = vmatprep.subr.mxu0 0.0
        %584 = vmatpush2.msra.mxu0 0.0
        %585 = vmatprep.subr.mxu0 0.0
        %586 = vmatpush2.msra.mxu0 0.0
        %587 = vmatprep.subr.mxu0 0.0
        %588 = vmatpush2.msra.mxu0 0.0
        %589 = vmatprep.subr.mxu0 0.0
        %590 = vmatpush2.msra.mxu0 0.0
        %591 = vmatprep.subr.mxu0 0.0
        %592 = vmatpush2.msra.mxu0 0.0
        %593 = vmatprep.subr.mxu0 0.0
        %594 = vmatpush2.msra.mxu0 0.0
        %595 = vmatprep.subr.mxu0 0.0
        %596 = vmatpush2.msra.mxu0 0.0
        %597 = vmatprep.subr.mxu0 0.0
        %598 = vmatpush2.msra.mxu0 0.0
        %599 = vmatprep.subr.mxu0 0.0
        %600 = vmatpush2.msra.mxu0 0.0
        %601 = vmatprep.subr.mxu0 0.0
        %602 = vmatpush2.msra.mxu0 0.0
        %603 = vmatprep.subr.mxu0 0.0
        %604 = vmatpush2.msra.mxu0 0.0
        %605 = vmatprep.subr.mxu0 0.0
        %606 = vmatpush2.msra.mxu0 0.0
        %607 = vmatprep.mubr.f32.mxu0 0.0
        %608 = vmatmul.mubr.f32.gmra.mxu0 %v495
        %v609 = vpop.f32.mrf.mxu0
        %v610 = vadd.f32 %v536, %v609
        %v611 = vpop.f32.mrf.mxu0
        %v612 = vadd.f32 %v540, %v611
        %613 = vmatprep.mubr.f32.mxu0 0.0
        %614 = vmatmul.mubr.f32.gmra.mxu0 %v496
        %v615 = vpop.f32.mrf.mxu0
        %v616 = vadd.f32 %v536, %v615
        %v617 = vpop.f32.mrf.mxu0
        %v618 = vadd.f32 %v540, %v617
        %619 = vmatprep.mubr.f32.mxu0 0.0
        %620 = vmatmul.mubr.f32.gmra.mxu0 %v497
        %v621 = vpop.f32.mrf.mxu0
        %v622 = vadd.f32 %v536, %v621
        %v623 = vpop.f32.mrf.mxu0
        %v624 = vadd.f32 %v540, %v623
        %625 = vmatprep.mubr.f32.mxu0 0.0
        %626 = vmatmul.mubr.f32.gmra.mxu0 %v498
        %v627 = vpop.f32.mrf.mxu0
        %v628 = vadd.f32 %v536, %v627
        %v629 = vpop.f32.mrf.mxu0
        %v630 = vadd.f32 %v540, %v629
        %631 = vdwg.mxu0
        %v632 = vmax.f32 %v610, 0.0
        %v633 = vmax.f32 %v612, 0.0
        %v634 = vmax.f32 %v616, 0.0
        %v635 = vmax.f32 %v618, 0.0
        %v636 = vmax.f32 %v622, 0.0
        %v637 = vmax.f32 %v624, 0.0
        %v638 = vmax.f32 %v628, 0.0
        %v639 = vmax.f32 %v630, 0.0
        %640 = vst [vmem:[%s243] sm:$0xff] %v632
        %vm641 = vcmask 130048
        %642 = vst.msk [vmem:[%s243 + $0x8] sm:$0xff] %vm641, %v633
        %643 = vst [vmem:[%s243 + $0x10] sm:$0xff] %v634
        %644 = vst.msk [vmem:[%s243 + $0x18] sm:$0xff] %vm641, %v635
        %645 = vst [vmem:[%s243 + $0x20] sm:$0xff] %v636
        %646 = vst.msk [vmem:[%s243 + $0x28] sm:$0xff] %vm641, %v637
        %647 = vst [vmem:[%s243 + $0x30] sm:$0xff] %v638
        %648 = vst.msk [vmem:[%s243 + $0x38] sm:$0xff] %vm641, %v639
        %s649 = sand.u32 %s140, 1
        %s650 = scalar_lea.sflag [#allocation4], %s649
        %s651 = sand.u32 %s140, 1
        %s652 = smul.addr %s651, 64
        %s653 = scalar_lea.vmem [#allocation5], %s652
        // Predicated region
        $region45: #{elecnn_forward_batched.1} parent=39 // pred_check
          %p654 = pneg %p150
        $region46: #{elecnn_forward_batched.1} parent=39 // pred_check_branch
          %656 = sbr.rel (%p654) target = $region48
        $region47: #{elecnn_forward_batched.1} parent=39 // pred_region
          %s657 = smul.u32 4, %s22
          %s659 = ssub.s32 1024, 1024
          %660 = vsyncadd %s650, %s659
          %s661 = smul.addr %s657, 2
          %s662 = smul.addr %s661, 128
          %s663 = scalar_lea.hbm %s5, %s662
          %s664 = sshll.u32 %s653, 4
          %s665 = int_to_ptr.vmem [resolvable:$true] %s664
          %670 = dma.vmem_to_hbm [thread:$0]  %s665, 1024, %s663, %s650, 256, 256, 16
        $region48: #{elecnn_forward_batched.1} parent=39 // pred_fallthru
          _
      $region40: #{elecnn_forward_batched.1} parent=5 // pred_fallthru
        _
      %p671 = scmp.le.s32.totalorder 2, %s17
      // Predicated region
      $region49: #{elecnn_forward_batched.1} parent=5 // pred_check
        %p672 = pneg %p671
      $region50: #{elecnn_forward_batched.1} parent=5 // pred_check_branch
        %674 = sbr.rel (%p672) target = $region52
      $region51: #{elecnn_forward_batched.1} parent=5 // pred_region
        %s675 = ssub.s32 %s17, 2
        // Predicated region
        $region53: #{elecnn_forward_batched.1} parent=51 // pred_check
          %p676 = pneg %p156
        $region54: #{elecnn_forward_batched.1} parent=51 // pred_check_branch
          %678 = sbr.rel (%p676) target = $region56
        $region55: #{elecnn_forward_batched.1} parent=51 // pred_region
          %s679 = sand.u32 %s141, 1
          %s680 = scalar_lea.sflag [#allocation4], %s679
          %s681 = sand.u32 %s141, 1
          %s682 = smul.addr %s681, 64
          %s683 = scalar_lea.vmem [#allocation5], %s682
          %684 = dma.done %s680, 1024
        $region56: #{elecnn_forward_batched.1} parent=51 // pred_fallthru
          _
      $region52: #{elecnn_forward_batched.1} parent=5 // pred_fallthru
        _
    $region6: #{elecnn_forward_batched.1} parent=1 // loop_footer
      %s21 = sadd.s32 1, %s17
    $region7: #{elecnn_forward_batched.1} parent=1 // loop_footer_branch
      %16 = sbr.rel target = $region3
    $region8: #{elecnn_forward_batched.1} parent=1 // loop_exit
      _
    %685 = vsyncpa [#allocation3], 1
    %s686 = scalar_lea.sflag [#allocation3], 1
    %687 = vsyncpa %s686, 1
    %688 = vsyncpa [#allocation4], 1
    %s689 = scalar_lea.sflag [#allocation4], 1
    %690 = vsyncpa %s689, 1

</llo_original>
